<compile_context>
chip_gen: v6e
topology: v6e:2x2x1
jax: 0.10.0
libtpu: 0.0.40
codegen_flags: <defaults>
</compile_context>

<pallas_src>
import math

import jax
import jax.numpy as jnp
from jax.experimental import pallas as pl
from jax.experimental.pallas import tpu as pltpu

LN_EPS = 1e-5  # nn.LayerNorm default
_MIB = 1024 * 1024


def _patch_merge_kernel(x_ref, we_ref, wo_ref, bias_ref, out_ref):
    # x_ref:    (tr, 2, W2, 2C)  parity axis: 0 = h-even rows -> [x0|x2] channels,
    #                                          1 = h-odd rows  -> [x1|x3] channels.
    # we_ref:   (2C, Co)  reduction-weight rows for the h-even slab (gamma folded in).
    # wo_ref:   (2C, Co)  reduction-weight rows for the h-odd slab  (gamma folded in).
    # bias_ref: (1, Co)   f32, = beta @ W (LayerNorm beta pushed through the Linear).
    # out_ref:  (tr*W2, Co)
    tr, _, w2, two_c = x_ref.shape
    n = tr * w2
    inv_4c = 1.0 / (2.0 * two_c)

    # Free static-index split of the parity axis; cast to f32 for the LN stats.
    # (The (tr, W2, 2C) -> (tr*W2, 2C) fold is a layout no-op when W2 % 8 == 0.)
    e = x_ref[:, 0].astype(jnp.float32).reshape(n, two_c)
    o = x_ref[:, 1].astype(jnp.float32).reshape(n, two_c)

    # One-pass LayerNorm statistics over the merged 4C channels (f32), built
    # from the two 2C-wide slabs (no lane concat needed).
    s1 = jnp.sum(e, axis=-1, keepdims=True) + jnp.sum(o, axis=-1, keepdims=True)
    s2 = (jnp.sum(e * e, axis=-1, keepdims=True)
          + jnp.sum(o * o, axis=-1, keepdims=True))
    mean = s1 * inv_4c
    var = jnp.maximum(s2 * inv_4c - mean * mean, 0.0)
    inv = jax.lax.rsqrt(var + LN_EPS)

    y_e = ((e - mean) * inv).astype(we_ref.dtype)
    y_o = ((o - mean) * inv).astype(wo_ref.dtype)

    acc = jnp.dot(y_e, we_ref[...], preferred_element_type=jnp.float32)
    acc = acc + jnp.dot(y_o, wo_ref[...], preferred_element_type=jnp.float32)
    acc = acc + bias_ref[...]
    out_ref[...] = acc.astype(out_ref.dtype)


def _vmem_defaults():
    """Per-generation (tile_budget_bytes, vmem_limit_bytes)."""
    try:
        info = pltpu.get_tpu_info()
        cap = int(getattr(info, "vmem_capacity_bytes", 0) or 0)
    except Exception:
        cap = 0
    if cap >= 96 * _MIB:          # v5e / v6e class: 128 MiB physical VMEM
        return 32 * _MIB, 96 * _MIB
    if cap > 0:                   # v7x class: 64 MiB physical per TensorCore
        return 20 * _MIB, min(cap - 8 * _MIB, 56 * _MIB)
    return 16 * _MIB, 48 * _MIB   # unknown: conservative, safe everywhere


def _pick_row_tile(R, W2, C, in_bytes, out_bytes, w_bytes, tile_budget_bytes):
    """Rows of the B*H/2 axis per grid step (each row = W2 merged tokens)."""
    cdiv = lambda a, b: -(-a // b)
    # Per-row VMEM: input block (2, W2, 2C) and output (W2, 2C), both
    # double-buffered, plus ~6 f32 (W2, 2C) temporaries (e, o, y_e, y_o, acc, slack).
    per_row = W2 * 2 * C * (4 * in_bytes + 2 * out_bytes + 24)
    fixed = 4 * (2 * C) * (2 * C) * w_bytes + 4 * (2 * C) * 4 + 2 * _MIB
    budget_rows = max(1, (tile_budget_bytes - fixed) // per_row)

    cap_rows = max(1, cdiv(2048, W2))      # ~2k merged tokens: past the roofline knee
    tr = min(R, budget_rows, cap_rows)

    # Prefer >= 4 grid steps (DMA/compute overlap + megacore sharding), but never
    # shrink a tile below ~512 merged tokens.
    min_rows = min(R, max(1, cdiv(512, W2)))
    rows_for_4_steps = max(1, cdiv(R, 4))
    if tr > rows_for_4_steps:
        tr = max(rows_for_4_steps, min(min_rows, budget_rows))

    # Prefer an even step count (v7x: 2 TensorCores share the "parallel" axis).
    steps = cdiv(R, tr)
    if steps >= 3 and steps % 2 == 1:
        tr_even = max(1, cdiv(R, steps + 1))
        if cdiv(R, tr_even) % 2 == 0:
            tr = tr_even

    # The 2-D output block is (tr*W2, Co); its sublane extent must be a
    # multiple of 8 unless it spans the whole array (tr == R).
    if tr < R:
        m = 8 // math.gcd(W2, 8)
        tr = max(m, (tr // m) * m)
        if tr >= R:
            tr = R
    return int(max(tr, 1))


def patch_merge(x, gamma, beta, weight_t, *, mxu_dtype=None,
                tile_budget_bytes=None, vmem_limit_bytes=None):
    """PatchMerge.forward.

    x:          (B, H, W, C) channels-last activations.
    gamma/beta: (4C,) LayerNorm affine, torch [x0,x1,x2,x3] channel order.
    weight_t:   (4C, 2C) = torch reduction.weight.T (same channel order).
    Returns (B, H//2, W//2, 2C).
    """
    B, H, W, C = x.shape
    assert H % 2 == 0 and W % 2 == 0, "spatial dims must be even"
    H2, W2 = H // 2, W // 2
    two_c = 2 * C
    c_out = weight_t.shape[-1]
    R = B * H2

    default_budget, default_limit = _vmem_defaults()
    if tile_budget_bytes is None:
        tile_budget_bytes = default_budget
    if vmem_limit_bytes is None:
        vmem_limit_bytes = default_limit

    # Free row-major view: (B, H, W, C) -> (B*H2, 2, W2, 2C).
    # Axis 1 = H parity; last dim packs (W parity, channel) = [w-even C | w-odd C].
    xr = x.reshape(R, 2, W2, two_c)

    # Hoisted, grid-invariant parameter prep.  Fold in f32, cast once at the end.
    if mxu_dtype is None:
        w_dtype = jnp.bfloat16 if x.dtype == jnp.bfloat16 else weight_t.dtype
    else:
        w_dtype = jnp.dtype(mxu_dtype)
    w_f32 = weight_t.astype(jnp.float32)            # (4C, Co)
    g_f32 = gamma.astype(jnp.float32)
    b_f32 = beta.astype(jnp.float32)
    w_scaled = w_f32 * g_f32[:, None]                # diag(gamma) @ W
    bias = b_f32[None, :] @ w_f32                    # (1, Co), beta @ W, stays f32
    # Split the weight rows into the kernel's h-even ([x0|x2]) / h-odd ([x1|x3]) slabs.
    w_e = jnp.concatenate([w_scaled[0:C], w_scaled[2 * C:3 * C]],
                          axis=0).astype(w_dtype)    # (2C, Co)
    w_o = jnp.concatenate([w_scaled[C:2 * C], w_scaled[3 * C:4 * C]],
                          axis=0).astype(w_dtype)    # (2C, Co)

    tr = _pick_row_tile(R, W2, C,
                        in_bytes=x.dtype.itemsize,
                        out_bytes=x.dtype.itemsize,
                        w_bytes=jnp.dtype(w_dtype).itemsize,
                        tile_budget_bytes=tile_budget_bytes)
    grid = (pl.cdiv(R, tr),)

    out = pl.pallas_call(
        _patch_merge_kernel,
        out_shape=jax.ShapeDtypeStruct((R * W2, c_out), x.dtype),
        grid_spec=pltpu.PrefetchScalarGridSpec(
            num_scalar_prefetch=0,
            grid=grid,
            in_specs=[
                # One fully contiguous (tr, 2, W2, 2C) slab per step (single DMA).
                pl.BlockSpec((tr, 2, W2, two_c), lambda i: (i, 0, 0, 0)),
                # Grid-invariant pre-folded weights and bias.
                pl.BlockSpec((two_c, c_out), lambda i: (0, 0)),
                pl.BlockSpec((two_c, c_out), lambda i: (0, 0)),
                pl.BlockSpec((1, c_out), lambda i: (0, 0)),
            ],
            out_specs=pl.BlockSpec((tr * W2, c_out), lambda i: (i, 0)),
        ),
        compiler_params=pltpu.CompilerParams(
            dimension_semantics=("parallel",),
            vmem_limit_bytes=int(vmem_limit_bytes),
        ),
    )(xr, w_e, w_o, bias)

    return out.reshape(B, H2, W2, c_out)


def reference_patch_merge(x, gamma, beta, weight_t):
    x0 = x[..., 0::2, 0::2, :]
    x1 = x[..., 1::2, 0::2, :]
    x2 = x[..., 0::2, 1::2, :]
    x3 = x[..., 1::2, 1::2, :]
    xm = jnp.concatenate([x0, x1, x2, x3], axis=-1).astype(jnp.float32)
    mean = jnp.mean(xm, axis=-1, keepdims=True)
    var = jnp.mean((xm - mean) ** 2, axis=-1, keepdims=True)
    y = (xm - mean) / jnp.sqrt(var + LN_EPS) * gamma + beta
    return (y @ weight_t.astype(jnp.float32)).astype(x.dtype)


if __name__ == "__main__":
    key = jax.random.PRNGKey(0)
    k_x, k_g, k_b, k_w = jax.random.split(key, 4)

    # dim = 64 -> LayerNorm over 256, reduction 256 -> 128 (lane-dense output).
    B, H, W, C = 2, 16, 16, 64
    x = jax.random.normal(k_x, (B, H, W, C), dtype=jnp.float32)

    # Shapes from PatchMerge.__init__:
    #   norm = LayerNorm(4*dim): gamma/beta (4*dim,)
    #   reduction = Linear(4*dim, 2*dim, bias=False): weight (2*dim, 4*dim),
    #   stored here pre-transposed as weight_t = (4*dim, 2*dim).
    gamma = 1.0 + 0.02 * jax.random.normal(k_g, (4 * C,), dtype=jnp.float32)
    beta = 0.02 * jax.random.normal(k_b, (4 * C,), dtype=jnp.float32)
    weight_t = 0.02 * jax.random.normal(k_w, (4 * C, 2 * C), dtype=jnp.float32)

    out = jax.block_until_ready(patch_merge(x, gamma, beta, weight_t))
    ref = reference_patch_merge(x, gamma, beta, weight_t)

    assert out.shape == (B, H // 2, W // 2, 2 * C), out.shape
    max_err = float(jnp.max(jnp.abs(out - ref)))
    assert jnp.allclose(out, ref, atol=2e-4, rtol=2e-4), max_err
    print("KERNEL_OK")
</pallas_src>

<mosaic_0001>
module attributes {stable_mosaic.version = 11 : i64} {
  func.func @_patch_merge_kernel(%arg0: i32, %arg1: memref<16x2x8x128xf32, #tpu.memory_space<vmem>>, %arg2: memref<128x128xf32, #tpu.memory_space<vmem>>, %arg3: memref<128x128xf32, #tpu.memory_space<vmem>>, %arg4: memref<1x128xf32, #tpu.memory_space<vmem>>, %arg5: memref<128x128xf32, #tpu.memory_space<vmem>>) attributes {dimension_semantics = [#tpu.dimension_semantics<parallel>], iteration_bounds = array<i64: 1>, scalar_prefetch = 0 : i64, scratch_operands = 0 : i64, tpu.core_type = #tpu.core_type<tc>, window_params = [{transform_indices = @transform_0, window_bounds = array<i64: 16, 2, 8, 128>}, {pipeline_mode = #tpu.pipeline_mode<synchronous>, transform_indices = @transform_1, window_bounds = array<i64: 128, 128>}, {pipeline_mode = #tpu.pipeline_mode<synchronous>, transform_indices = @transform_2, window_bounds = array<i64: 128, 128>}, {pipeline_mode = #tpu.pipeline_mode<synchronous>, transform_indices = @transform_3, window_bounds = array<i64: 1, 128>}, {transform_indices = @transform_4, window_bounds = array<i64: 128, 128>}]} {
    %c0 = arith.constant 0 : index
    %c0_0 = arith.constant 0 : index
    %c0_1 = arith.constant 0 : index
    %c0_2 = arith.constant 0 : index
    %0 = vector.load %arg1[%c0, %c0_0, %c0_1, %c0_2] : memref<16x2x8x128xf32, #tpu.memory_space<vmem>>, vector<16x1x8x128xf32>
    %1 = vector.shape_cast %0 : vector<16x1x8x128xf32> to vector<16x8x128xf32>
    %2 = vector.shape_cast %1 : vector<16x8x128xf32> to vector<128x128xf32>
    %c0_3 = arith.constant 0 : index
    %c1 = arith.constant 1 : index
    %c0_4 = arith.constant 0 : index
    %c0_5 = arith.constant 0 : index
    %3 = vector.load %arg1[%c0_3, %c1, %c0_4, %c0_5] : memref<16x2x8x128xf32, #tpu.memory_space<vmem>>, vector<16x1x8x128xf32>
    %4 = vector.shape_cast %3 : vector<16x1x8x128xf32> to vector<16x8x128xf32>
    %5 = vector.shape_cast %4 : vector<16x8x128xf32> to vector<128x128xf32>
    %cst = arith.constant dense<0.000000e+00> : vector<128xf32>
    %6 = vector.multi_reduction <add>, %2, %cst [1] : vector<128x128xf32> to vector<128xf32>
    %7 = vector.shape_cast %6 : vector<128xf32> to vector<128x1xf32>
    %cst_6 = arith.constant dense<0.000000e+00> : vector<128xf32>
    %8 = vector.multi_reduction <add>, %5, %cst_6 [1] : vector<128x128xf32> to vector<128xf32>
    %9 = vector.shape_cast %8 : vector<128xf32> to vector<128x1xf32>
    %10 = arith.addf %7, %9 : vector<128x1xf32>
    %11 = arith.mulf %2, %2 : vector<128x128xf32>
    %cst_7 = arith.constant dense<0.000000e+00> : vector<128xf32>
    %12 = vector.multi_reduction <add>, %11, %cst_7 [1] : vector<128x128xf32> to vector<128xf32>
    %13 = vector.shape_cast %12 : vector<128xf32> to vector<128x1xf32>
    %14 = arith.mulf %5, %5 : vector<128x128xf32>
    %cst_8 = arith.constant dense<0.000000e+00> : vector<128xf32>
    %15 = vector.multi_reduction <add>, %14, %cst_8 [1] : vector<128x128xf32> to vector<128xf32>
    %16 = vector.shape_cast %15 : vector<128xf32> to vector<128x1xf32>
    %17 = arith.addf %13, %16 : vector<128x1xf32>
    %cst_9 = arith.constant 3.906250e-03 : f32
    %18 = vector.broadcast %cst_9 : f32 to vector<128x1xf32>
    %19 = arith.mulf %10, %18 : vector<128x1xf32>
    %cst_10 = arith.constant 3.906250e-03 : f32
    %20 = vector.broadcast %cst_10 : f32 to vector<128x1xf32>
    %21 = arith.mulf %17, %20 : vector<128x1xf32>
    %22 = arith.mulf %19, %19 : vector<128x1xf32>
    %23 = arith.subf %21, %22 : vector<128x1xf32>
    %cst_11 = arith.constant 0.000000e+00 : f32
    %24 = vector.broadcast %cst_11 : f32 to vector<128x1xf32>
    %25 = arith.maximumf %23, %24 : vector<128x1xf32>
    %cst_12 = arith.constant 9.99999974E-6 : f32
    %26 = vector.broadcast %cst_12 : f32 to vector<128x1xf32>
    %27 = arith.addf %25, %26 : vector<128x1xf32>
    %28 = math.rsqrt %27 : vector<128x1xf32>
    %29 = vector.broadcast %19 : vector<128x1xf32> to vector<128x128xf32>
    %30 = arith.subf %2, %29 : vector<128x128xf32>
    %31 = vector.broadcast %28 : vector<128x1xf32> to vector<128x128xf32>
    %32 = arith.mulf %30, %31 : vector<128x128xf32>
    %33 = vector.broadcast %19 : vector<128x1xf32> to vector<128x128xf32>
    %34 = arith.subf %5, %33 : vector<128x128xf32>
    %35 = vector.broadcast %28 : vector<128x1xf32> to vector<128x128xf32>
    %36 = arith.mulf %34, %35 : vector<128x128xf32>
    %c0_13 = arith.constant 0 : index
    %c0_14 = arith.constant 0 : index
    %37 = vector.load %arg2[%c0_13, %c0_14] : memref<128x128xf32, #tpu.memory_space<vmem>>, vector<128x128xf32>
    %cst_15 = arith.constant dense<0.000000e+00> : vector<128x128xf32>
    %38 = tpu.matmul %32, %37, %cst_15 {dimension_numbers = #tpu.dot_dimension_numbers<[1], [0], [0], [1], [0, 0, 1, 1], [], []>} : vector<128x128xf32>, vector<128x128xf32>, vector<128x128xf32> -> vector<128x128xf32>
    %c0_16 = arith.constant 0 : index
    %c0_17 = arith.constant 0 : index
    %39 = vector.load %arg3[%c0_16, %c0_17] : memref<128x128xf32, #tpu.memory_space<vmem>>, vector<128x128xf32>
    %cst_18 = arith.constant dense<0.000000e+00> : vector<128x128xf32>
    %40 = tpu.matmul %36, %39, %cst_18 {dimension_numbers = #tpu.dot_dimension_numbers<[1], [0], [0], [1], [0, 0, 1, 1], [], []>} : vector<128x128xf32>, vector<128x128xf32>, vector<128x128xf32> -> vector<128x128xf32>
    %41 = arith.addf %38, %40 : vector<128x128xf32>
    %c0_19 = arith.constant 0 : index
    %c0_20 = arith.constant 0 : index
    %42 = vector.load %arg4[%c0_19, %c0_20] : memref<1x128xf32, #tpu.memory_space<vmem>>, vector<1x128xf32>
    %43 = vector.broadcast %42 : vector<1x128xf32> to vector<128x128xf32>
    %44 = arith.addf %41, %43 : vector<128x128xf32>
    %c0_21 = arith.constant 0 : index
    %c0_22 = arith.constant 0 : index
    %45 = vector.load %arg5[%c0_21, %c0_22] : memref<128x128xf32, #tpu.memory_space<vmem>>, vector<128x128xf32>
    tpu.vector_store %arg5[%c0_21, %c0_22], %44 {strides = array<i32>} : memref<128x128xf32, #tpu.memory_space<vmem>>, vector<128x128xf32>,
    return
  }
  func.func @transform_0(%arg0: i32) -> (i32, i32, i32, i32) {
    %c0_i32 = arith.constant 0 : i32
    %c0_i32_0 = arith.constant 0 : i32
    %c0_i32_1 = arith.constant 0 : i32
    %c0_i32_2 = arith.constant 0 : i32
    return %arg0, %c0_i32, %c0_i32_0, %c0_i32_1 : i32, i32, i32, i32
  }
  func.func @transform_1(%arg0: i32) -> (i32, i32) {
    %c0_i32 = arith.constant 0 : i32
    %c0_i32_0 = arith.constant 0 : i32
    %c0_i32_1 = arith.constant 0 : i32
    return %c0_i32, %c0_i32_0 : i32, i32
  }
  func.func @transform_2(%arg0: i32) -> (i32, i32) {
    %c0_i32 = arith.constant 0 : i32
    %c0_i32_0 = arith.constant 0 : i32
    %c0_i32_1 = arith.constant 0 : i32
    return %c0_i32, %c0_i32_0 : i32, i32
  }
  func.func @transform_3(%arg0: i32) -> (i32, i32) {
    %c0_i32 = arith.constant 0 : i32
    %c0_i32_0 = arith.constant 0 : i32
    %c0_i32_1 = arith.constant 0 : i32
    return %c0_i32, %c0_i32_0 : i32, i32
  }
  func.func @transform_4(%arg0: i32) -> (i32, i32) {
    %c0_i32 = arith.constant 0 : i32
    %c0_i32_0 = arith.constant 0 : i32
    return %arg0, %c0_i32 : i32, i32
  }
}

</mosaic_0001>

<llo_original>
// kernel: tpu_custom_call.1
$region0: #{tpu_custom_call.1}
  #allocation0 [shape = 'u32[]', space=smem, size = 0x4, offset = 0x4, fixed_abs, tag = 'smem constant byte address 0x4 - core index']
  #allocation1 [shape = 'u32[144,128]{1,0:T(1,128)}', space=vmem, size = 0x12000, scoped, tag = 'internal scratch']
  %s0 = inlined_call_operand.hbm [shape: f32[16,2,8,128], index: 0, kind: input, shape index: {}]
  %s1 = inlined_call_operand.hbm [shape: f32[128,128], index: 1, kind: input, shape index: {}]
  %s2 = inlined_call_operand.hbm [shape: f32[128,128], index: 2, kind: input, shape index: {}]
  %s3 = inlined_call_operand.vmem [shape: f32[1,128], index: 3, kind: input, shape index: {}]
  %s4 = inlined_call_operand.hbm [shape: f32[128,128], index: 4, kind: output, shape index: {}]
  %s5 = sld [smem:[#allocation0]]
  $region38: #{tpu_custom_call.1} parent=0
    _
  %s7 = ssub.s32 1, %s5
  %s8 = scalar_select 0, %s7, %s5
  $region1: #{tpu_custom_call.1} parent=0
    #allocation2 [shape = 'u8[131072]{0}', space=vmem, size = 0x20000, scoped, tag = 'input window, operand 0, single buffered']
    #allocation3 [shape = 's32[1]{0}', space=sflag, size = 0x4, scoped, tag = 'scoped memory for tpu_custom_call.1']
    #allocation4 [shape = 's32[1]{0}', space=sflag, size = 0x4, scoped, tag = 'scoped memory for tpu_custom_call.1']
    #allocation5 [shape = 'u8[65536]{0}', space=vmem, size = 0x10000, scoped, tag = 'input window, operand 1, single buffered']
    #allocation6 [shape = 's32[1]{0}', space=sflag, size = 0x4, scoped, tag = 'scoped memory for tpu_custom_call.1']
    #allocation7 [shape = 'u8[65536]{0}', space=vmem, size = 0x10000, scoped, tag = 'input window, operand 2, single buffered']
    #allocation8 [shape = 'u8[65536]{0}', space=vmem, size = 0x10000, scoped, tag = 'output window, operand 0, single buffered']
    %9 = vsyncpa [#allocation3], 0
    %10 = vsyncpa [#allocation6], 0
    %11 = vsyncpa [#allocation4], 0
    // Predicated region
    $region2: #{tpu_custom_call.1} parent=1 // pred_check
      _
    $region3: #{tpu_custom_call.1} parent=1 // pred_check_branch
      %13 = sbr.rel (0) target = $region5
    $region4: #{tpu_custom_call.1} parent=1 // pred_region
      %s15 = ssub.s32 4096, 4096
      %16 = vsyncadd [#allocation3], %s15
      %s17 = sshll.u32 [#allocation2], 4
      %s18 = int_to_ptr.vmem [resolvable:$true] %s17
      %23 = dma.hbm_to_vmem [thread:$0]  %s0, 4096, %s18, [#allocation3], 128, 128, 8
    $region5: #{tpu_custom_call.1} parent=1 // pred_fallthru
      _
    // Predicated region
    $region6: #{tpu_custom_call.1} parent=1 // pred_check
      _
    $region7: #{tpu_custom_call.1} parent=1 // pred_check_branch
      %25 = sbr.rel (0) target = $region9
    $region8: #{tpu_custom_call.1} parent=1 // pred_region
      %s27 = ssub.s32 2048, 2048
      %28 = vsyncadd [#allocation6], %s27
      %s29 = sshll.u32 [#allocation5], 4
      %s30 = int_to_ptr.vmem [resolvable:$true] %s29
      %35 = dma.hbm_to_vmem [thread:$0]  %s1, 2048, %s30, [#allocation6], 128, 128, 8
    $region9: #{tpu_custom_call.1} parent=1 // pred_fallthru
      _
    // Predicated region
    $region10: #{tpu_custom_call.1} parent=1 // pred_check
      _
    $region11: #{tpu_custom_call.1} parent=1 // pred_check_branch
      %37 = sbr.rel (0) target = $region13
    $region12: #{tpu_custom_call.1} parent=1 // pred_region
      %s39 = ssub.s32 2048, 2048
      %40 = vsyncadd [#allocation6], %s39
      %s41 = sshll.u32 [#allocation7], 4
      %s42 = int_to_ptr.vmem [resolvable:$true] %s41
      %47 = dma.hbm_to_vmem [thread:$0]  %s2, 2048, %s42, [#allocation6], 128, 128, 8
    $region13: #{tpu_custom_call.1} parent=1 // pred_fallthru
      _
    // Predicated region
    $region14: #{tpu_custom_call.1} parent=1 // pred_check
      _
    $region15: #{tpu_custom_call.1} parent=1 // pred_check_branch
      %49 = sbr.rel (0) target = $region17
    $region16: #{tpu_custom_call.1} parent=1 // pred_region
      _
    $region17: #{tpu_custom_call.1} parent=1 // pred_fallthru
      _
    // Predicated region
    $region18: #{tpu_custom_call.1} parent=1 // pred_check
      _
    $region19: #{tpu_custom_call.1} parent=1 // pred_check_branch
      %51 = sbr.rel (0) target = $region21
    $region20: #{tpu_custom_call.1} parent=1 // pred_region
      %52 = dma.done [#allocation3], 4096
    $region21: #{tpu_custom_call.1} parent=1 // pred_fallthru
      _
    // Predicated region
    $region22: #{tpu_custom_call.1} parent=1 // pred_check
      _
    $region23: #{tpu_custom_call.1} parent=1 // pred_check_branch
      %54 = sbr.rel (0) target = $region25
    $region24: #{tpu_custom_call.1} parent=1 // pred_region
      %55 = dma.done [#allocation6], 2048
    $region25: #{tpu_custom_call.1} parent=1 // pred_fallthru
      _
    // Predicated region
    $region26: #{tpu_custom_call.1} parent=1 // pred_check
      _
    $region27: #{tpu_custom_call.1} parent=1 // pred_check_branch
      %57 = sbr.rel (0) target = $region29
    $region28: #{tpu_custom_call.1} parent=1 // pred_region
      %58 = dma.done [#allocation6], 2048
    $region29: #{tpu_custom_call.1} parent=1 // pred_fallthru
      _
    %v59 = vld [vmem:[#allocation2] sm:$0xff]
    %v60 = vld [vmem:[#allocation2 + $0x10] sm:$0xff]
    %v61 = vld [vmem:[#allocation2 + $0x20] sm:$0xff]
    %v62 = vld [vmem:[#allocation2 + $0x30] sm:$0xff]
    %v63 = vld [vmem:[#allocation2 + $0x40] sm:$0xff]
    %v64 = vld [vmem:[#allocation2 + $0x50] sm:$0xff]
    %v65 = vld [vmem:[#allocation2 + $0x60] sm:$0xff]
    %v66 = vld [vmem:[#allocation2 + $0x70] sm:$0xff]
    %v67 = vld [vmem:[#allocation2 + $0x80] sm:$0xff]
    %v68 = vld [vmem:[#allocation2 + $0x90] sm:$0xff]
    %v69 = vld [vmem:[#allocation2 + $0xa0] sm:$0xff]
    %v70 = vld [vmem:[#allocation2 + $0xb0] sm:$0xff]
    %v71 = vld [vmem:[#allocation2 + $0xc0] sm:$0xff]
    %v72 = vld [vmem:[#allocation2 + $0xd0] sm:$0xff]
    %v73 = vld [vmem:[#allocation2 + $0xe0] sm:$0xff]
    %v74 = vld [vmem:[#allocation2 + $0xf0] sm:$0xff]
    %s75 = scalar_lea.vmem [#allocation2], 8
    %v76 = vld [vmem:[%s75] sm:$0xff]
    %v77 = vld [vmem:[%s75 + $0x10] sm:$0xff]
    %v78 = vld [vmem:[%s75 + $0x20] sm:$0xff]
    %v79 = vld [vmem:[%s75 + $0x30] sm:$0xff]
    %v80 = vld [vmem:[%s75 + $0x40] sm:$0xff]
    %v81 = vld [vmem:[%s75 + $0x50] sm:$0xff]
    %v82 = vld [vmem:[%s75 + $0x60] sm:$0xff]
    %v83 = vld [vmem:[%s75 + $0x70] sm:$0xff]
    %v84 = vld [vmem:[%s75 + $0x80] sm:$0xff]
    %v85 = vld [vmem:[%s75 + $0x90] sm:$0xff]
    %v86 = vld [vmem:[%s75 + $0xa0] sm:$0xff]
    %v87 = vld [vmem:[%s75 + $0xb0] sm:$0xff]
    %v88 = vld [vmem:[%s75 + $0xc0] sm:$0xff]
    %v89 = vld [vmem:[%s75 + $0xd0] sm:$0xff]
    %v90 = vld [vmem:[%s75 + $0xe0] sm:$0xff]
    %v91 = vld [vmem:[%s75 + $0xf0] sm:$0xff]
    %92 = vadd.xlane.f32.xlu0 %v59
    %v93 = vpop.xlane.xlu0 %92
    %94 = vadd.xlane.f32.xlu0 %v60
    %v95 = vpop.xlane.xlu0 %94
    %96 = vadd.xlane.f32.xlu0 %v61
    %v97 = vpop.xlane.xlu0 %96
    %98 = vadd.xlane.f32.xlu0 %v62
    %v99 = vpop.xlane.xlu0 %98
    %100 = vadd.xlane.f32.xlu0 %v63
    %v101 = vpop.xlane.xlu0 %100
    %102 = vadd.xlane.f32.xlu0 %v64
    %v103 = vpop.xlane.xlu0 %102
    %104 = vadd.xlane.f32.xlu0 %v65
    %v105 = vpop.xlane.xlu0 %104
    %106 = vadd.xlane.f32.xlu0 %v66
    %v107 = vpop.xlane.xlu0 %106
    %108 = vadd.xlane.f32.xlu0 %v67
    %v109 = vpop.xlane.xlu0 %108
    %110 = vadd.xlane.f32.xlu0 %v68
    %v111 = vpop.xlane.xlu0 %110
    %112 = vadd.xlane.f32.xlu0 %v69
    %v113 = vpop.xlane.xlu0 %112
    %114 = vadd.xlane.f32.xlu0 %v70
    %v115 = vpop.xlane.xlu0 %114
    %116 = vadd.xlane.f32.xlu0 %v71
    %v117 = vpop.xlane.xlu0 %116
    %118 = vadd.xlane.f32.xlu0 %v72
    %v119 = vpop.xlane.xlu0 %118
    %120 = vadd.xlane.f32.xlu0 %v73
    %v121 = vpop.xlane.xlu0 %120
    %122 = vadd.xlane.f32.xlu0 %v74
    %v123 = vpop.xlane.xlu0 %122
    %124 = vadd.xlane.f32.xlu0 %v76
    %v125 = vpop.xlane.xlu0 %124
    %126 = vadd.xlane.f32.xlu0 %v77
    %v127 = vpop.xlane.xlu0 %126
    %128 = vadd.xlane.f32.xlu0 %v78
    %v129 = vpop.xlane.xlu0 %128
    %130 = vadd.xlane.f32.xlu0 %v79
    %v131 = vpop.xlane.xlu0 %130
    %132 = vadd.xlane.f32.xlu0 %v80
    %v133 = vpop.xlane.xlu0 %132
    %134 = vadd.xlane.f32.xlu0 %v81
    %v135 = vpop.xlane.xlu0 %134
    %136 = vadd.xlane.f32.xlu0 %v82
    %v137 = vpop.xlane.xlu0 %136
    %138 = vadd.xlane.f32.xlu0 %v83
    %v139 = vpop.xlane.xlu0 %138
    %140 = vadd.xlane.f32.xlu0 %v84
    %v141 = vpop.xlane.xlu0 %140
    %142 = vadd.xlane.f32.xlu0 %v85
    %v143 = vpop.xlane.xlu0 %142
    %144 = vadd.xlane.f32.xlu0 %v86
    %v145 = vpop.xlane.xlu0 %144
    %146 = vadd.xlane.f32.xlu0 %v87
    %v147 = vpop.xlane.xlu0 %146
    %148 = vadd.xlane.f32.xlu0 %v88
    %v149 = vpop.xlane.xlu0 %148
    %150 = vadd.xlane.f32.xlu0 %v89
    %v151 = vpop.xlane.xlu0 %150
    %152 = vadd.xlane.f32.xlu0 %v90
    %v153 = vpop.xlane.xlu0 %152
    %154 = vadd.xlane.f32.xlu0 %v91
    %v155 = vpop.xlane.xlu0 %154
    %v156 = vadd.f32 %v93, %v125
    %v157 = vadd.f32 %v95, %v127
    %v158 = vadd.f32 %v97, %v129
    %v159 = vadd.f32 %v99, %v131
    %v160 = vadd.f32 %v101, %v133
    %v161 = vadd.f32 %v103, %v135
    %v162 = vadd.f32 %v105, %v137
    %v163 = vadd.f32 %v107, %v139
    %v164 = vadd.f32 %v109, %v141
    %v165 = vadd.f32 %v111, %v143
    %v166 = vadd.f32 %v113, %v145
    %v167 = vadd.f32 %v115, %v147
    %v168 = vadd.f32 %v117, %v149
    %v169 = vadd.f32 %v119, %v151
    %v170 = vadd.f32 %v121, %v153
    %v171 = vadd.f32 %v123, %v155
    %v172 = vmul.f32 %v59, %v59
    %v173 = vmul.f32 %v60, %v60
    %v174 = vmul.f32 %v61, %v61
    %v175 = vmul.f32 %v62, %v62
    %v176 = vmul.f32 %v63, %v63
    %v177 = vmul.f32 %v64, %v64
    %v178 = vmul.f32 %v65, %v65
    %v179 = vmul.f32 %v66, %v66
    %v180 = vmul.f32 %v67, %v67
    %v181 = vmul.f32 %v68, %v68
    %v182 = vmul.f32 %v69, %v69
    %v183 = vmul.f32 %v70, %v70
    %v184 = vmul.f32 %v71, %v71
    %v185 = vmul.f32 %v72, %v72
    %v186 = vmul.f32 %v73, %v73
    %v187 = vmul.f32 %v74, %v74
    %188 = vadd.xlane.f32.xlu0 %v172
    %v189 = vpop.xlane.xlu0 %188
    %190 = vadd.xlane.f32.xlu0 %v173
    %v191 = vpop.xlane.xlu0 %190
    %192 = vadd.xlane.f32.xlu0 %v174
    %v193 = vpop.xlane.xlu0 %192
    %194 = vadd.xlane.f32.xlu0 %v175
    %v195 = vpop.xlane.xlu0 %194
    %196 = vadd.xlane.f32.xlu0 %v176
    %v197 = vpop.xlane.xlu0 %196
    %198 = vadd.xlane.f32.xlu0 %v177
    %v199 = vpop.xlane.xlu0 %198
    %200 = vadd.xlane.f32.xlu0 %v178
    %v201 = vpop.xlane.xlu0 %200
    %202 = vadd.xlane.f32.xlu0 %v179
    %v203 = vpop.xlane.xlu0 %202
    %204 = vadd.xlane.f32.xlu0 %v180
    %v205 = vpop.xlane.xlu0 %204
    %206 = vadd.xlane.f32.xlu0 %v181
    %v207 = vpop.xlane.xlu0 %206
    %208 = vadd.xlane.f32.xlu0 %v182
    %v209 = vpop.xlane.xlu0 %208
    %210 = vadd.xlane.f32.xlu0 %v183
    %v211 = vpop.xlane.xlu0 %210
    %212 = vadd.xlane.f32.xlu0 %v184
    %v213 = vpop.xlane.xlu0 %212
    %214 = vadd.xlane.f32.xlu0 %v185
    %v215 = vpop.xlane.xlu0 %214
    %216 = vadd.xlane.f32.xlu0 %v186
    %v217 = vpop.xlane.xlu0 %216
    %218 = vadd.xlane.f32.xlu0 %v187
    %v219 = vpop.xlane.xlu0 %218
    %v220 = vmul.f32 %v76, %v76
    %v221 = vmul.f32 %v77, %v77
    %v222 = vmul.f32 %v78, %v78
    %v223 = vmul.f32 %v79, %v79
    %v224 = vmul.f32 %v80, %v80
    %v225 = vmul.f32 %v81, %v81
    %v226 = vmul.f32 %v82, %v82
    %v227 = vmul.f32 %v83, %v83
    %v228 = vmul.f32 %v84, %v84
    %v229 = vmul.f32 %v85, %v85
    %v230 = vmul.f32 %v86, %v86
    %v231 = vmul.f32 %v87, %v87
    %v232 = vmul.f32 %v88, %v88
    %v233 = vmul.f32 %v89, %v89
    %v234 = vmul.f32 %v90, %v90
    %v235 = vmul.f32 %v91, %v91
    %236 = vadd.xlane.f32.xlu0 %v220
    %v237 = vpop.xlane.xlu0 %236
    %238 = vadd.xlane.f32.xlu0 %v221
    %v239 = vpop.xlane.xlu0 %238
    %240 = vadd.xlane.f32.xlu0 %v222
    %v241 = vpop.xlane.xlu0 %240
    %242 = vadd.xlane.f32.xlu0 %v223
    %v243 = vpop.xlane.xlu0 %242
    %244 = vadd.xlane.f32.xlu0 %v224
    %v245 = vpop.xlane.xlu0 %244
    %246 = vadd.xlane.f32.xlu0 %v225
    %v247 = vpop.xlane.xlu0 %246
    %248 = vadd.xlane.f32.xlu0 %v226
    %v249 = vpop.xlane.xlu0 %248
    %250 = vadd.xlane.f32.xlu0 %v227
    %v251 = vpop.xlane.xlu0 %250
    %252 = vadd.xlane.f32.xlu0 %v228
    %v253 = vpop.xlane.xlu0 %252
    %254 = vadd.xlane.f32.xlu0 %v229
    %v255 = vpop.xlane.xlu0 %254
    %256 = vadd.xlane.f32.xlu0 %v230
    %v257 = vpop.xlane.xlu0 %256
    %258 = vadd.xlane.f32.xlu0 %v231
    %v259 = vpop.xlane.xlu0 %258
    %260 = vadd.xlane.f32.xlu0 %v232
    %v261 = vpop.xlane.xlu0 %260
    %262 = vadd.xlane.f32.xlu0 %v233
    %v263 = vpop.xlane.xlu0 %262
    %264 = vadd.xlane.f32.xlu0 %v234
    %v265 = vpop.xlane.xlu0 %264
    %266 = vadd.xlane.f32.xlu0 %v235
    %v267 = vpop.xlane.xlu0 %266
    %v268 = vadd.f32 %v189, %v237
    %v269 = vadd.f32 %v191, %v239
    %v270 = vadd.f32 %v193, %v241
    %v271 = vadd.f32 %v195, %v243
    %v272 = vadd.f32 %v197, %v245
    %v273 = vadd.f32 %v199, %v247
    %v274 = vadd.f32 %v201, %v249
    %v275 = vadd.f32 %v203, %v251
    %v276 = vadd.f32 %v205, %v253
    %v277 = vadd.f32 %v207, %v255
    %v278 = vadd.f32 %v209, %v257
    %v279 = vadd.f32 %v211, %v259
    %v280 = vadd.f32 %v213, %v261
    %v281 = vadd.f32 %v215, %v263
    %v282 = vadd.f32 %v217, %v265
    %v283 = vadd.f32 %v219, %v267
    %v284 = vmul.f32 %v156, 0.00390625
    %v285 = vmul.f32 %v157, 0.00390625
    %v286 = vmul.f32 %v158, 0.00390625
    %v287 = vmul.f32 %v159, 0.00390625
    %v288 = vmul.f32 %v160, 0.00390625
    %v289 = vmul.f32 %v161, 0.00390625
    %v290 = vmul.f32 %v162, 0.00390625
    %v291 = vmul.f32 %v163, 0.00390625
    %v292 = vmul.f32 %v164, 0.00390625
    %v293 = vmul.f32 %v165, 0.00390625
    %v294 = vmul.f32 %v166, 0.00390625
    %v295 = vmul.f32 %v167, 0.00390625
    %v296 = vmul.f32 %v168, 0.00390625
    %v297 = vmul.f32 %v169, 0.00390625
    %v298 = vmul.f32 %v170, 0.00390625
    %v299 = vmul.f32 %v171, 0.00390625
    %v300 = vmul.f32 %v268, 0.00390625
    %v301 = vmul.f32 %v269, 0.00390625
    %v302 = vmul.f32 %v270, 0.00390625
    %v303 = vmul.f32 %v271, 0.00390625
    %v304 = vmul.f32 %v272, 0.00390625
    %v305 = vmul.f32 %v273, 0.00390625
    %v306 = vmul.f32 %v274, 0.00390625
    %v307 = vmul.f32 %v275, 0.00390625
    %v308 = vmul.f32 %v276, 0.00390625
    %v309 = vmul.f32 %v277, 0.00390625
    %v310 = vmul.f32 %v278, 0.00390625
    %v311 = vmul.f32 %v279, 0.00390625
    %v312 = vmul.f32 %v280, 0.00390625
    %v313 = vmul.f32 %v281, 0.00390625
    %v314 = vmul.f32 %v282, 0.00390625
    %v315 = vmul.f32 %v283, 0.00390625
    %v316 = vmul.f32 %v284, %v284
    %v317 = vmul.f32 %v285, %v285
    %v318 = vmul.f32 %v286, %v286
    %v319 = vmul.f32 %v287, %v287
    %v320 = vmul.f32 %v288, %v288
    %v321 = vmul.f32 %v289, %v289
    %v322 = vmul.f32 %v290, %v290
    %v323 = vmul.f32 %v291, %v291
    %v324 = vmul.f32 %v292, %v292
    %v325 = vmul.f32 %v293, %v293
    %v326 = vmul.f32 %v294, %v294
    %v327 = vmul.f32 %v295, %v295
    %v328 = vmul.f32 %v296, %v296
    %v329 = vmul.f32 %v297, %v297
    %v330 = vmul.f32 %v298, %v298
    %v331 = vmul.f32 %v299, %v299
    %v332 = vsub.f32 %v300, %v316
    %v333 = vsub.f32 %v301, %v317
    %v334 = vsub.f32 %v302, %v318
    %v335 = vsub.f32 %v303, %v319
    %v336 = vsub.f32 %v304, %v320
    %v337 = vsub.f32 %v305, %v321
    %v338 = vsub.f32 %v306, %v322
    %v339 = vsub.f32 %v307, %v323
    %v340 = vsub.f32 %v308, %v324
    %v341 = vsub.f32 %v309, %v325
    %v342 = vsub.f32 %v310, %v326
    %v343 = vsub.f32 %v311, %v327
    %v344 = vsub.f32 %v312, %v328
    %v345 = vsub.f32 %v313, %v329
    %v346 = vsub.f32 %v314, %v330
    %v347 = vsub.f32 %v315, %v331
    %v348 = vmax.f32 %v332, 0.0
    %v349 = vmax.f32 %v333, 0.0
    %v350 = vmax.f32 %v334, 0.0
    %v351 = vmax.f32 %v335, 0.0
    %v352 = vmax.f32 %v336, 0.0
    %v353 = vmax.f32 %v337, 0.0
    %v354 = vmax.f32 %v338, 0.0
    %v355 = vmax.f32 %v339, 0.0
    %v356 = vmax.f32 %v340, 0.0
    %v357 = vmax.f32 %v341, 0.0
    %v358 = vmax.f32 %v342, 0.0
    %v359 = vmax.f32 %v343, 0.0
    %v360 = vmax.f32 %v344, 0.0
    %v361 = vmax.f32 %v345, 0.0
    %v362 = vmax.f32 %v346, 0.0
    %v363 = vmax.f32 %v347, 0.0
    %v364 = vadd.f32 %v348, 1e-05
    %v365 = vadd.f32 %v349, 1e-05
    %v366 = vadd.f32 %v350, 1e-05
    %v367 = vadd.f32 %v351, 1e-05
    %v368 = vadd.f32 %v352, 1e-05
    %v369 = vadd.f32 %v353, 1e-05
    %v370 = vadd.f32 %v354, 1e-05
    %v371 = vadd.f32 %v355, 1e-05
    %v372 = vadd.f32 %v356, 1e-05
    %v373 = vadd.f32 %v357, 1e-05
    %v374 = vadd.f32 %v358, 1e-05
    %v375 = vadd.f32 %v359, 1e-05
    %v376 = vadd.f32 %v360, 1e-05
    %v377 = vadd.f32 %v361, 1e-05
    %v378 = vadd.f32 %v362, 1e-05
    %v379 = vadd.f32 %v363, 1e-05
    %v380 = vrsqrt.pop %v364
    %v381 = vrsqrt.pop %v365
    %v382 = vrsqrt.pop %v366
    %v383 = vrsqrt.pop %v367
    %v384 = vrsqrt.pop %v368
    %v385 = vrsqrt.pop %v369
    %v386 = vrsqrt.pop %v370
    %v387 = vrsqrt.pop %v371
    %v388 = vrsqrt.pop %v372
    %v389 = vrsqrt.pop %v373
    %v390 = vrsqrt.pop %v374
    %v391 = vrsqrt.pop %v375
    %v392 = vrsqrt.pop %v376
    %v393 = vrsqrt.pop %v377
    %v394 = vrsqrt.pop %v378
    %v395 = vrsqrt.pop %v379
    %v396 = vsub.f32 %v59, %v284
    %v397 = vsub.f32 %v60, %v285
    %v398 = vsub.f32 %v61, %v286
    %v399 = vsub.f32 %v62, %v287
    %v400 = vsub.f32 %v63, %v288
    %v401 = vsub.f32 %v64, %v289
    %v402 = vsub.f32 %v65, %v290
    %v403 = vsub.f32 %v66, %v291
    %v404 = vsub.f32 %v67, %v292
    %v405 = vsub.f32 %v68, %v293
    %v406 = vsub.f32 %v69, %v294
    %v407 = vsub.f32 %v70, %v295
    %v408 = vsub.f32 %v71, %v296
    %v409 = vsub.f32 %v72, %v297
    %v410 = vsub.f32 %v73, %v298
    %v411 = vsub.f32 %v74, %v299
    %v412 = vmul.f32 %v396, %v380
    %v413 = vmul.f32 %v397, %v381
    %v414 = vmul.f32 %v398, %v382
    %v415 = vmul.f32 %v399, %v383
    %v416 = vmul.f32 %v400, %v384
    %v417 = vmul.f32 %v401, %v385
    %v418 = vmul.f32 %v402, %v386
    %v419 = vmul.f32 %v403, %v387
    %v420 = vmul.f32 %v404, %v388
    %v421 = vmul.f32 %v405, %v389
    %v422 = vmul.f32 %v406, %v390
    %v423 = vmul.f32 %v407, %v391
    %v424 = vmul.f32 %v408, %v392
    %v425 = vmul.f32 %v409, %v393
    %v426 = vmul.f32 %v410, %v394
    %v427 = vmul.f32 %v411, %v395
    %v428 = vsub.f32 %v76, %v284
    %v429 = vsub.f32 %v77, %v285
    %v430 = vsub.f32 %v78, %v286
    %v431 = vsub.f32 %v79, %v287
    %v432 = vsub.f32 %v80, %v288
    %v433 = vsub.f32 %v81, %v289
    %v434 = vsub.f32 %v82, %v290
    %v435 = vsub.f32 %v83, %v291
    %v436 = vsub.f32 %v84, %v292
    %v437 = vsub.f32 %v85, %v293
    %v438 = vsub.f32 %v86, %v294
    %v439 = vsub.f32 %v87, %v295
    %v440 = vsub.f32 %v88, %v296
    %v441 = vsub.f32 %v89, %v297
    %v442 = vsub.f32 %v90, %v298
    %v443 = vsub.f32 %v91, %v299
    %v444 = vmul.f32 %v428, %v380
    %v445 = vmul.f32 %v429, %v381
    %v446 = vmul.f32 %v430, %v382
    %v447 = vmul.f32 %v431, %v383
    %v448 = vmul.f32 %v432, %v384
    %v449 = vmul.f32 %v433, %v385
    %v450 = vmul.f32 %v434, %v386
    %v451 = vmul.f32 %v435, %v387
    %v452 = vmul.f32 %v436, %v388
    %v453 = vmul.f32 %v437, %v389
    %v454 = vmul.f32 %v438, %v390
    %v455 = vmul.f32 %v439, %v391
    %v456 = vmul.f32 %v440, %v392
    %v457 = vmul.f32 %v441, %v393
    %v458 = vmul.f32 %v442, %v394
    %v459 = vmul.f32 %v443, %v395
    %v460 = vld [vmem:[#allocation5] sm:$0xff]
    %v461 = vld [vmem:[#allocation5 + $0x8] sm:$0xff]
    %v462 = vld [vmem:[#allocation5 + $0x10] sm:$0xff]
    %v463 = vld [vmem:[#allocation5 + $0x18] sm:$0xff]
    %v464 = vld [vmem:[#allocation5 + $0x20] sm:$0xff]
    %v465 = vld [vmem:[#allocation5 + $0x28] sm:$0xff]
    %v466 = vld [vmem:[#allocation5 + $0x30] sm:$0xff]
    %v467 = vld [vmem:[#allocation5 + $0x38] sm:$0xff]
    %v468 = vld [vmem:[#allocation5 + $0x40] sm:$0xff]
    %v469 = vld [vmem:[#allocation5 + $0x48] sm:$0xff]
    %v470 = vld [vmem:[#allocation5 + $0x50] sm:$0xff]
    %v471 = vld [vmem:[#allocation5 + $0x58] sm:$0xff]
    %v472 = vld [vmem:[#allocation5 + $0x60] sm:$0xff]
    %v473 = vld [vmem:[#allocation5 + $0x68] sm:$0xff]
    %v474 = vld [vmem:[#allocation5 + $0x70] sm:$0xff]
    %v475 = vld [vmem:[#allocation5 + $0x78] sm:$0xff]
    %v476 = vld [vmem:[#allocation7] sm:$0xff]
    %v477 = vld [vmem:[#allocation7 + $0x8] sm:$0xff]
    %v478 = vld [vmem:[#allocation7 + $0x10] sm:$0xff]
    %v479 = vld [vmem:[#allocation7 + $0x18] sm:$0xff]
    %v480 = vld [vmem:[#allocation7 + $0x20] sm:$0xff]
    %v481 = vld [vmem:[#allocation7 + $0x28] sm:$0xff]
    %v482 = vld [vmem:[#allocation7 + $0x30] sm:$0xff]
    %v483 = vld [vmem:[#allocation7 + $0x38] sm:$0xff]
    %v484 = vld [vmem:[#allocation7 + $0x40] sm:$0xff]
    %v485 = vld [vmem:[#allocation7 + $0x48] sm:$0xff]
    %v486 = vld [vmem:[#allocation7 + $0x50] sm:$0xff]
    %v487 = vld [vmem:[#allocation7 + $0x58] sm:$0xff]
    %v488 = vld [vmem:[#allocation7 + $0x60] sm:$0xff]
    %v489 = vld [vmem:[#allocation7 + $0x68] sm:$0xff]
    %v490 = vld [vmem:[#allocation7 + $0x70] sm:$0xff]
    %v491 = vld [vmem:[#allocation7 + $0x78] sm:$0xff]
    %492 = vmatprep.subr.mxu0 0.0
    %493 = vmatpush1.msra.mxu0 %v491
    %494 = vmatprep.subr.mxu0 0.0
    %495 = vmatpush1.msra.mxu0 %v490
    %496 = vmatprep.subr.mxu0 0.0
    %497 = vmatpush1.msra.mxu0 %v489
    %498 = vmatprep.subr.mxu0 0.0
    %499 = vmatpush1.msra.mxu0 %v488
    %500 = vmatprep.subr.mxu0 0.0
    %501 = vmatpush1.msra.mxu0 %v487
    %502 = vmatprep.subr.mxu0 0.0
    %503 = vmatpush1.msra.mxu0 %v486
    %504 = vmatprep.subr.mxu0 0.0
    %505 = vmatpush1.msra.mxu0 %v485
    %506 = vmatprep.subr.mxu0 0.0
    %507 = vmatpush1.msra.mxu0 %v484
    %508 = vmatprep.subr.mxu0 0.0
    %509 = vmatpush1.msra.mxu0 %v483
    %510 = vmatprep.subr.mxu0 0.0
    %511 = vmatpush1.msra.mxu0 %v482
    %512 = vmatprep.subr.mxu0 0.0
    %513 = vmatpush1.msra.mxu0 %v481
    %514 = vmatprep.subr.mxu0 0.0
    %515 = vmatpush1.msra.mxu0 %v480
    %516 = vmatprep.subr.mxu0 0.0
    %517 = vmatpush1.msra.mxu0 %v479
    %518 = vmatprep.subr.mxu0 0.0
    %519 = vmatpush1.msra.mxu0 %v478
    %520 = vmatprep.subr.mxu0 0.0
    %521 = vmatpush1.msra.mxu0 %v477
    %522 = vmatprep.subr.mxu0 0.0
    %523 = vmatpush1.msra.mxu0 %v476
    %524 = vmatprep.subr.mxu0 0.0
    %525 = vmatpush2.msra.mxu0 0.0
    %526 = vmatprep.subr.mxu0 0.0
    %527 = vmatpush2.msra.mxu0 0.0
    %528 = vmatprep.subr.mxu0 0.0
    %529 = vmatpush2.msra.mxu0 0.0
    %530 = vmatprep.subr.mxu0 0.0
    %531 = vmatpush2.msra.mxu0 0.0
    %532 = vmatprep.subr.mxu0 0.0
    %533 = vmatpush2.msra.mxu0 0.0
    %534 = vmatprep.subr.mxu0 0.0
    %535 = vmatpush2.msra.mxu0 0.0
    %536 = vmatprep.subr.mxu0 0.0
    %537 = vmatpush2.msra.mxu0 0.0
    %538 = vmatprep.subr.mxu0 0.0
    %539 = vmatpush2.msra.mxu0 0.0
    %540 = vmatprep.subr.mxu0 0.0
    %541 = vmatpush2.msra.mxu0 0.0
    %542 = vmatprep.subr.mxu0 0.0
    %543 = vmatpush2.msra.mxu0 0.0
    %544 = vmatprep.subr.mxu0 0.0
    %545 = vmatpush2.msra.mxu0 0.0
    %546 = vmatprep.subr.mxu0 0.0
    %547 = vmatpush2.msra.mxu0 0.0
    %548 = vmatprep.subr.mxu0 0.0
    %549 = vmatpush2.msra.mxu0 0.0
    %550 = vmatprep.subr.mxu0 0.0
    %551 = vmatpush2.msra.mxu0 0.0
    %552 = vmatprep.subr.mxu0 0.0
    %553 = vmatpush2.msra.mxu0 0.0
    %554 = vmatprep.subr.mxu0 0.0
    %555 = vmatpush2.msra.mxu0 0.0
    %556 = vmatprep.mubr.f32.mxu0 0.0
    %557 = vmatmul.mubr.f32.gmra.mxu0 %v444
    %v558 = vpop.f32.mrf.mxu0
    %v559 = vadd.f32 0.0, %v558
    %v560 = vpop.f32.mrf.mxu0
    %561 = vmatprep.mubr.f32.mxu0 0.0
    %562 = vmatmul.mubr.f32.gmra.mxu0 %v445
    %v563 = vpop.f32.mrf.mxu0
    %v564 = vadd.f32 0.0, %v563
    %v565 = vpop.f32.mrf.mxu0
    %566 = vmatprep.mubr.f32.mxu0 0.0
    %567 = vmatmul.mubr.f32.gmra.mxu0 %v446
    %v568 = vpop.f32.mrf.mxu0
    %v569 = vadd.f32 0.0, %v568
    %v570 = vpop.f32.mrf.mxu0
    %571 = vmatprep.mubr.f32.mxu0 0.0
    %572 = vmatmul.mubr.f32.gmra.mxu0 %v447
    %v573 = vpop.f32.mrf.mxu0
    %v574 = vadd.f32 0.0, %v573
    %v575 = vpop.f32.mrf.mxu0
    %576 = vmatprep.mubr.f32.mxu0 0.0
    %577 = vmatmul.mubr.f32.gmra.mxu0 %v448
    %v578 = vpop.f32.mrf.mxu0
    %v579 = vadd.f32 0.0, %v578
    %v580 = vpop.f32.mrf.mxu0
    %581 = vmatprep.mubr.f32.mxu0 0.0
    %582 = vmatmul.mubr.f32.gmra.mxu0 %v449
    %v583 = vpop.f32.mrf.mxu0
    %v584 = vadd.f32 0.0, %v583
    %v585 = vpop.f32.mrf.mxu0
    %586 = vmatprep.mubr.f32.mxu0 0.0
    %587 = vmatmul.mubr.f32.gmra.mxu0 %v450
    %v588 = vpop.f32.mrf.mxu0
    %v589 = vadd.f32 0.0, %v588
    %v590 = vpop.f32.mrf.mxu0
    %591 = vmatprep.mubr.f32.mxu0 0.0
    %592 = vmatmul.mubr.f32.gmra.mxu0 %v451
    %v593 = vpop.f32.mrf.mxu0
    %v594 = vadd.f32 0.0, %v593
    %v595 = vpop.f32.mrf.mxu0
    %596 = vmatprep.mubr.f32.mxu0 0.0
    %597 = vmatmul.mubr.f32.gmra.mxu0 %v452
    %v598 = vpop.f32.mrf.mxu0
    %v599 = vadd.f32 0.0, %v598
    %v600 = vpop.f32.mrf.mxu0
    %601 = vmatprep.mubr.f32.mxu0 0.0
    %602 = vmatmul.mubr.f32.gmra.mxu0 %v453
    %v603 = vpop.f32.mrf.mxu0
    %v604 = vadd.f32 0.0, %v603
    %v605 = vpop.f32.mrf.mxu0
    %606 = vmatprep.mubr.f32.mxu0 0.0
    %607 = vmatmul.mubr.f32.gmra.mxu0 %v454
    %v608 = vpop.f32.mrf.mxu0
    %v609 = vadd.f32 0.0, %v608
    %v610 = vpop.f32.mrf.mxu0
    %611 = vmatprep.mubr.f32.mxu0 0.0
    %612 = vmatmul.mubr.f32.gmra.mxu0 %v455
    %v613 = vpop.f32.mrf.mxu0
    %v614 = vadd.f32 0.0, %v613
    %v615 = vpop.f32.mrf.mxu0
    %616 = vmatprep.mubr.f32.mxu0 0.0
    %617 = vmatmul.mubr.f32.gmra.mxu0 %v456
    %v618 = vpop.f32.mrf.mxu0
    %v619 = vadd.f32 0.0, %v618
    %v620 = vpop.f32.mrf.mxu0
    %621 = vmatprep.mubr.f32.mxu0 0.0
    %622 = vmatmul.mubr.f32.gmra.mxu0 %v457
    %v623 = vpop.f32.mrf.mxu0
    %v624 = vadd.f32 0.0, %v623
    %v625 = vpop.f32.mrf.mxu0
    %626 = vmatprep.mubr.f32.mxu0 0.0
    %627 = vmatmul.mubr.f32.gmra.mxu0 %v458
    %v628 = vpop.f32.mrf.mxu0
    %v629 = vadd.f32 0.0, %v628
    %v630 = vpop.f32.mrf.mxu0
    %631 = vmatprep.mubr.f32.mxu0 0.0
    %632 = vmatmul.mubr.f32.gmra.mxu0 %v459
    %v633 = vpop.f32.mrf.mxu0
    %v634 = vadd.f32 0.0, %v633
    %v635 = vpop.f32.mrf.mxu0
    %636 = vdwg.mxu0
    %637 = vmatprep.subr.mxu0 0.0
    %638 = vmatpush1.msra.mxu0 %v475
    %639 = vmatprep.subr.mxu0 0.0
    %640 = vmatpush1.msra.mxu0 %v474
    %641 = vmatprep.subr.mxu0 0.0
    %642 = vmatpush1.msra.mxu0 %v473
    %643 = vmatprep.subr.mxu0 0.0
    %644 = vmatpush1.msra.mxu0 %v472
    %645 = vmatprep.subr.mxu0 0.0
    %646 = vmatpush1.msra.mxu0 %v471
    %647 = vmatprep.subr.mxu0 0.0
    %648 = vmatpush1.msra.mxu0 %v470
    %649 = vmatprep.subr.mxu0 0.0
    %650 = vmatpush1.msra.mxu0 %v469
    %651 = vmatprep.subr.mxu0 0.0
    %652 = vmatpush1.msra.mxu0 %v468
    %653 = vmatprep.subr.mxu0 0.0
    %654 = vmatpush1.msra.mxu0 %v467
    %655 = vmatprep.subr.mxu0 0.0
    %656 = vmatpush1.msra.mxu0 %v466
    %657 = vmatprep.subr.mxu0 0.0
    %658 = vmatpush1.msra.mxu0 %v465
    %659 = vmatprep.subr.mxu0 0.0
    %660 = vmatpush1.msra.mxu0 %v464
    %661 = vmatprep.subr.mxu0 0.0
    %662 = vmatpush1.msra.mxu0 %v463
    %663 = vmatprep.subr.mxu0 0.0
    %664 = vmatpush1.msra.mxu0 %v462
    %665 = vmatprep.subr.mxu0 0.0
    %666 = vmatpush1.msra.mxu0 %v461
    %667 = vmatprep.subr.mxu0 0.0
    %668 = vmatpush1.msra.mxu0 %v460
    %669 = vmatprep.subr.mxu0 0.0
    %670 = vmatpush2.msra.mxu0 0.0
    %671 = vmatprep.subr.mxu0 0.0
    %672 = vmatpush2.msra.mxu0 0.0
    %673 = vmatprep.subr.mxu0 0.0
    %674 = vmatpush2.msra.mxu0 0.0
    %675 = vmatprep.subr.mxu0 0.0
    %676 = vmatpush2.msra.mxu0 0.0
    %677 = vmatprep.subr.mxu0 0.0
    %678 = vmatpush2.msra.mxu0 0.0
    %679 = vmatprep.subr.mxu0 0.0
    %680 = vmatpush2.msra.mxu0 0.0
    %681 = vmatprep.subr.mxu0 0.0
    %682 = vmatpush2.msra.mxu0 0.0
    %683 = vmatprep.subr.mxu0 0.0
    %684 = vmatpush2.msra.mxu0 0.0
    %685 = vmatprep.subr.mxu0 0.0
    %686 = vmatpush2.msra.mxu0 0.0
    %687 = vmatprep.subr.mxu0 0.0
    %688 = vmatpush2.msra.mxu0 0.0
    %689 = vmatprep.subr.mxu0 0.0
    %690 = vmatpush2.msra.mxu0 0.0
    %691 = vmatprep.subr.mxu0 0.0
    %692 = vmatpush2.msra.mxu0 0.0
    %693 = vmatprep.subr.mxu0 0.0
    %694 = vmatpush2.msra.mxu0 0.0
    %695 = vmatprep.subr.mxu0 0.0
    %696 = vmatpush2.msra.mxu0 0.0
    %697 = vmatprep.subr.mxu0 0.0
    %698 = vmatpush2.msra.mxu0 0.0
    %699 = vmatprep.subr.mxu0 0.0
    %700 = vmatpush2.msra.mxu0 0.0
    %701 = vmatprep.mubr.f32.mxu0 0.0
    %702 = vmatmul.mubr.f32.gmra.mxu0 %v412
    %v703 = vpop.f32.mrf.mxu0
    %v704 = vadd.f32 %v559, %v703
    %v705 = vpop.f32.mrf.mxu0
    %706 = vmatprep.mubr.f32.mxu0 0.0
    %707 = vmatmul.mubr.f32.gmra.mxu0 %v413
    %v708 = vpop.f32.mrf.mxu0
    %v709 = vadd.f32 %v564, %v708
    %v710 = vpop.f32.mrf.mxu0
    %711 = vmatprep.mubr.f32.mxu0 0.0
    %712 = vmatmul.mubr.f32.gmra.mxu0 %v414
    %v713 = vpop.f32.mrf.mxu0
    %v714 = vadd.f32 %v569, %v713
    %v715 = vpop.f32.mrf.mxu0
    %716 = vmatprep.mubr.f32.mxu0 0.0
    %717 = vmatmul.mubr.f32.gmra.mxu0 %v415
    %v718 = vpop.f32.mrf.mxu0
    %v719 = vadd.f32 %v574, %v718
    %v720 = vpop.f32.mrf.mxu0
    %721 = vmatprep.mubr.f32.mxu0 0.0
    %722 = vmatmul.mubr.f32.gmra.mxu0 %v416
    %v723 = vpop.f32.mrf.mxu0
    %v724 = vadd.f32 %v579, %v723
    %v725 = vpop.f32.mrf.mxu0
    %726 = vmatprep.mubr.f32.mxu0 0.0
    %727 = vmatmul.mubr.f32.gmra.mxu0 %v417
    %v728 = vpop.f32.mrf.mxu0
    %v729 = vadd.f32 %v584, %v728
    %v730 = vpop.f32.mrf.mxu0
    %731 = vmatprep.mubr.f32.mxu0 0.0
    %732 = vmatmul.mubr.f32.gmra.mxu0 %v418
    %v733 = vpop.f32.mrf.mxu0
    %v734 = vadd.f32 %v589, %v733
    %v735 = vpop.f32.mrf.mxu0
    %736 = vmatprep.mubr.f32.mxu0 0.0
    %737 = vmatmul.mubr.f32.gmra.mxu0 %v419
    %v738 = vpop.f32.mrf.mxu0
    %v739 = vadd.f32 %v594, %v738
    %v740 = vpop.f32.mrf.mxu0
    %741 = vmatprep.mubr.f32.mxu0 0.0
    %742 = vmatmul.mubr.f32.gmra.mxu0 %v420
    %v743 = vpop.f32.mrf.mxu0
    %v744 = vadd.f32 %v599, %v743
    %v745 = vpop.f32.mrf.mxu0
    %746 = vmatprep.mubr.f32.mxu0 0.0
    %747 = vmatmul.mubr.f32.gmra.mxu0 %v421
    %v748 = vpop.f32.mrf.mxu0
    %v749 = vadd.f32 %v604, %v748
    %v750 = vpop.f32.mrf.mxu0
    %751 = vmatprep.mubr.f32.mxu0 0.0
    %752 = vmatmul.mubr.f32.gmra.mxu0 %v422
    %v753 = vpop.f32.mrf.mxu0
    %v754 = vadd.f32 %v609, %v753
    %v755 = vpop.f32.mrf.mxu0
    %756 = vmatprep.mubr.f32.mxu0 0.0
    %757 = vmatmul.mubr.f32.gmra.mxu0 %v423
    %v758 = vpop.f32.mrf.mxu0
    %v759 = vadd.f32 %v614, %v758
    %v760 = vpop.f32.mrf.mxu0
    %761 = vmatprep.mubr.f32.mxu0 0.0
    %762 = vmatmul.mubr.f32.gmra.mxu0 %v424
    %v763 = vpop.f32.mrf.mxu0
    %v764 = vadd.f32 %v619, %v763
    %v765 = vpop.f32.mrf.mxu0
    %766 = vmatprep.mubr.f32.mxu0 0.0
    %767 = vmatmul.mubr.f32.gmra.mxu0 %v425
    %v768 = vpop.f32.mrf.mxu0
    %v769 = vadd.f32 %v624, %v768
    %v770 = vpop.f32.mrf.mxu0
    %771 = vmatprep.mubr.f32.mxu0 0.0
    %772 = vmatmul.mubr.f32.gmra.mxu0 %v426
    %v773 = vpop.f32.mrf.mxu0
    %v774 = vadd.f32 %v629, %v773
    %v775 = vpop.f32.mrf.mxu0
    %776 = vmatprep.mubr.f32.mxu0 0.0
    %777 = vmatmul.mubr.f32.gmra.mxu0 %v427
    %v778 = vpop.f32.mrf.mxu0
    %v779 = vadd.f32 %v634, %v778
    %v780 = vpop.f32.mrf.mxu0
    %781 = vdwg.mxu0
    %v782 = vld [vmem:[%s3] sm:$0x1]
    %v784 = vlaneseq
    %v785 = vshrl.u32 %v784, 7
    %v786 = vsub.s32 0, %v785
    %v787 = vrot.slane %v782, %v786
    %v789 = vadd.f32 %v704, %v787
    %v790 = vadd.f32 %v709, %v787
    %v791 = vadd.f32 %v714, %v787
    %v792 = vadd.f32 %v719, %v787
    %v793 = vadd.f32 %v724, %v787
    %v794 = vadd.f32 %v729, %v787
    %v795 = vadd.f32 %v734, %v787
    %v796 = vadd.f32 %v739, %v787
    %v797 = vadd.f32 %v744, %v787
    %v798 = vadd.f32 %v749, %v787
    %v799 = vadd.f32 %v754, %v787
    %v800 = vadd.f32 %v759, %v787
    %v801 = vadd.f32 %v764, %v787
    %v802 = vadd.f32 %v769, %v787
    %v803 = vadd.f32 %v774, %v787
    %v804 = vadd.f32 %v779, %v787
    %805 = vst [vmem:[#allocation8] sm:$0xff] %v789
    %806 = vst [vmem:[#allocation8 + $0x8] sm:$0xff] %v790
    %807 = vst [vmem:[#allocation8 + $0x10] sm:$0xff] %v791
    %808 = vst [vmem:[#allocation8 + $0x18] sm:$0xff] %v792
    %809 = vst [vmem:[#allocation8 + $0x20] sm:$0xff] %v793
    %810 = vst [vmem:[#allocation8 + $0x28] sm:$0xff] %v794
    %811 = vst [vmem:[#allocation8 + $0x30] sm:$0xff] %v795
    %812 = vst [vmem:[#allocation8 + $0x38] sm:$0xff] %v796
    %813 = vst [vmem:[#allocation8 + $0x40] sm:$0xff] %v797
    %814 = vst [vmem:[#allocation8 + $0x48] sm:$0xff] %v798
    %815 = vst [vmem:[#allocation8 + $0x50] sm:$0xff] %v799
    %816 = vst [vmem:[#allocation8 + $0x58] sm:$0xff] %v800
    %817 = vst [vmem:[#allocation8 + $0x60] sm:$0xff] %v801
    %818 = vst [vmem:[#allocation8 + $0x68] sm:$0xff] %v802
    %819 = vst [vmem:[#allocation8 + $0x70] sm:$0xff] %v803
    %820 = vst [vmem:[#allocation8 + $0x78] sm:$0xff] %v804
    // Predicated region
    $region30: #{tpu_custom_call.1} parent=1 // pred_check
      _
    $region31: #{tpu_custom_call.1} parent=1 // pred_check_branch
      %822 = sbr.rel (0) target = $region33
    $region32: #{tpu_custom_call.1} parent=1 // pred_region
      %s824 = ssub.s32 2048, 2048
      %825 = vsyncadd [#allocation4], %s824
      %s826 = sshll.u32 [#allocation8], 4
      %s827 = int_to_ptr.vmem [resolvable:$true] %s826
      %832 = dma.vmem_to_hbm [thread:$0]  %s827, 2048, %s4, [#allocation4], 128, 128, 8
    $region33: #{tpu_custom_call.1} parent=1 // pred_fallthru
      _
    // Predicated region
    $region34: #{tpu_custom_call.1} parent=1 // pred_check
      _
    $region35: #{tpu_custom_call.1} parent=1 // pred_check_branch
      %834 = sbr.rel (0) target = $region37
    $region36: #{tpu_custom_call.1} parent=1 // pred_region
      %835 = dma.done [#allocation4], 2048
    $region37: #{tpu_custom_call.1} parent=1 // pred_fallthru
      _
    %836 = vsyncpa [#allocation3], 1
    %837 = vsyncpa [#allocation6], 1
    %838 = vsyncpa [#allocation4], 1

</llo_original>
